<compile_context>
chip_gen: v7x
topology: tpu7x:2x2x1
jax: 0.10.0
libtpu: 0.0.40
codegen_flags: <defaults>
</compile_context>

<pallas_src>
import jax
import jax.numpy as jnp
from jax.experimental import pallas as pl
from jax.experimental.pallas import tpu as pltpu

_LANE = 128            # lane width: hidden / class dims padded to this
_SUB = 8               # sublane alignment for slab sections
_FMA_UNROLL_MAX = 8    # layer 1 uses VPU FMAs if num_features <= this


def _round_up(n, m):
    return ((n + m - 1) // m) * m


def prepare_params(w1, b1, w2, b2):
    """One-time conversion: PyTorch nn.Linear layout -> one packed VMEM slab.

    PyTorch: w1 (width, F), b1 (width,), w2 (C, width), b2 (C,).
    Slab (rows, L) f32, every section starting on an 8-sublane boundary:
        rows [r_w1 : r_w1+F )   w1^T  (F,  Wp)   (zero-padded to 8 rows, L lanes)
        rows [r_b1 : r_b1+1 )   b1    (1,  Wp)
        rows [r_w2 : r_w2+Wp)   w2^T  (Wp, Cp)
        rows [r_b2 : r_b2+1 )   b2    (1,  Cp)
    Hidden width Wp and class count Cp are zero-padded to multiples of 128
    (exact: ReLU keeps padded-hidden zeros, padded w2 rows/cols are zero).
    """
    width, num_features = w1.shape
    num_classes = w2.shape[0]
    Wp = _round_up(width, _LANE)
    Cp = _round_up(num_classes, _LANE)
    L = max(Wp, Cp)
    f32 = jnp.float32

    w1_sec = jnp.zeros((_round_up(num_features, _SUB), L), f32)
    w1_sec = w1_sec.at[:num_features, :width].set(jnp.transpose(w1).astype(f32))
    b1_sec = jnp.zeros((_SUB, L), f32).at[0, :width].set(b1.astype(f32))
    w2_sec = jnp.zeros((Wp, L), f32)
    w2_sec = w2_sec.at[:width, :num_classes].set(jnp.transpose(w2).astype(f32))
    b2_sec = jnp.zeros((_SUB, L), f32).at[0, :num_classes].set(b2.astype(f32))

    r_w1 = 0
    r_b1 = r_w1 + w1_sec.shape[0]
    r_w2 = r_b1 + b1_sec.shape[0]
    r_b2 = r_w2 + w2_sec.shape[0]
    slab = jnp.concatenate([w1_sec, b1_sec, w2_sec, b2_sec], axis=0)

    meta = dict(F=num_features, W=width, C=num_classes, Wp=Wp, Cp=Cp,
                r_w1=r_w1, r_b1=r_b1, r_w2=r_w2, r_b2=r_b2,
                rows=slab.shape[0], lanes=L)
    return slab, meta


def _make_kernel(meta):
    F, Wp, Cp = meta["F"], meta["Wp"], meta["Cp"]
    r_w1, r_b1, r_w2, r_b2 = meta["r_w1"], meta["r_b1"], meta["r_w2"], meta["r_b2"]

    def kernel(x_ref, p_ref, o_ref):
        x = x_ref[...].astype(jnp.float32)

        # ---- Layer 1: Linear(F -> Wp) ----
        h = p_ref[r_b1:r_b1 + 1, :Wp].astype(jnp.float32)          # (1, Wp)
        if F <= _FMA_UNROLL_MAX:
            # Tiny contraction: unrolled broadcast FMAs on the VPU (skips the
            # MXU push -> result-FIFO latency of a ~1%-utilized matmul).
            # NOTE: MXU path below is the better choice once F grows past ~8.
            for f in range(F):
                w_row = p_ref[r_w1 + f:r_w1 + f + 1, :Wp].astype(jnp.float32)
                h = h + x[:, f:f + 1] * w_row
        else:
            h = h + jnp.dot(x, p_ref[r_w1:r_w1 + F, :Wp].astype(jnp.float32),
                            preferred_element_type=jnp.float32)

        # ---- ReLU (padded hidden lanes stay exactly zero) ----
        h = jnp.maximum(h, 0.0)

        # ---- Layer 2: Linear(Wp -> Cp) on the MXU, full tile, f32 acc.
        #      Output is lane-dense (B, Cp) -> unmasked stores. ----
        out = jnp.dot(h, p_ref[r_w2:r_w2 + Wp, :Cp].astype(jnp.float32),
                      preferred_element_type=jnp.float32)
        out = out + p_ref[r_b2:r_b2 + 1, :Cp].astype(jnp.float32)
        o_ref[...] = out.astype(o_ref.dtype)

    return kernel


def widenet_forward(x, slab, meta, *, batch_block=1024):
    """Fused forward. Expects the packed slab from prepare_params().
    Returns (B, num_classes)."""
    B, F_in = x.shape
    F, C, Cp = meta["F"], meta["C"], meta["Cp"]
    assert F_in == F, "x feature dim does not match prepared params"
    assert slab.shape == (meta["rows"], meta["lanes"]), "params not prepared"

    kernel = _make_kernel(meta)
    vmem = pltpu.MemorySpace.VMEM

    if B <= batch_block:
        # Grid-less small-batch path: 2 input DMAs (x + packed params),
        # 1 lane-dense output DMA, no pipeline scaffolding.
        out = pl.pallas_call(
            kernel,
            out_shape=jax.ShapeDtypeStruct((B, Cp), x.dtype),
            in_specs=[pl.BlockSpec(memory_space=vmem),
                      pl.BlockSpec(memory_space=vmem)],
            out_specs=pl.BlockSpec(memory_space=vmem),
        )(x, slab)
    else:
        # Batch-gridded path: params get a constant index_map (stay resident
        # in VMEM), x/out blocks double-buffer; "parallel" shards the batch
        # axis across v7x's two TensorCores.
        TB = batch_block
        out = pl.pallas_call(
            kernel,
            out_shape=jax.ShapeDtypeStruct((B, Cp), x.dtype),
            grid_spec=pltpu.PrefetchScalarGridSpec(
                num_scalar_prefetch=0,
                grid=(pl.cdiv(B, TB),),
                in_specs=[
                    pl.BlockSpec((TB, F), lambda i: (i, 0)),
                    pl.BlockSpec((meta["rows"], meta["lanes"]),
                                 lambda i: (0, 0)),
                ],
                out_specs=pl.BlockSpec((TB, Cp), lambda i: (i, 0)),
            ),
            compiler_params=pltpu.CompilerParams(
                dimension_semantics=("parallel",)),
        )(x, slab)

    return out[:, :C]


if __name__ == "__main__":
    # WideNet.__init__ defaults.
    num_features = 2
    num_classes = 2
    width = 100
    batch = 8

    key = jax.random.PRNGKey(0)
    kx, k1, k2, k3, k4, kb = jax.random.split(key, 6)

    # Deterministic synthetic input / PyTorch-layout parameters.
    x = jax.random.normal(kx, (batch, num_features), dtype=jnp.float32)
    w1 = jax.random.normal(k1, (width, num_features), dtype=jnp.float32) * 0.1
    b1 = jax.random.normal(k2, (width,), dtype=jnp.float32) * 0.1
    w2 = jax.random.normal(k3, (num_classes, width), dtype=jnp.float32) * 0.1
    b2 = jax.random.normal(k4, (num_classes,), dtype=jnp.float32) * 0.1

    # One-time parameter packing (transpose / pad / concat hoisted out of the
    # forward path).
    slab, meta = prepare_params(w1, b1, w2, b2)
    slab = jax.block_until_ready(slab)

    # Pure-JAX reference (original, unpadded parameters).
    def ref_fn(xx):
        return jnp.maximum(xx @ w1.T + b1, 0.0) @ w2.T + b2

    # Small-batch (grid-less) path.
    out = jax.block_until_ready(widenet_forward(x, slab, meta))
    assert out.shape == (batch, num_classes)
    assert jnp.allclose(out, ref_fn(x), atol=1e-5, rtol=1e-5)

    # Batch-gridded (parallel) path sanity check.
    big_b = 1024
    xb = jax.random.normal(kb, (big_b, num_features), dtype=jnp.float32)
    out_b = jax.block_until_ready(
        widenet_forward(xb, slab, meta, batch_block=256))
    assert out_b.shape == (big_b, num_classes)
    assert jnp.allclose(out_b, ref_fn(xb), atol=1e-5, rtol=1e-5)

    print("KERNEL_OK")
</pallas_src>

<mosaic_0001>
module attributes {stable_mosaic.version = 11 : i64} {
  func.func @kernel(%arg0: memref<8x2xf32, #tpu.memory_space<vmem>>, %arg1: memref<152x128xf32, #tpu.memory_space<vmem>>, %arg2: memref<8x128xf32, #tpu.memory_space<vmem>>) attributes {dimension_semantics = [], scalar_prefetch = 0 : i64, scratch_operands = 0 : i64, tpu.core_type = #tpu.core_type<tc>} {
    %c0 = arith.constant 0 : index
    %c0_0 = arith.constant 0 : index
    %0 = vector.load %arg0[%c0, %c0_0] : memref<8x2xf32, #tpu.memory_space<vmem>>, vector<8x2xf32>
    %c8 = arith.constant 8 : index
    %c0_1 = arith.constant 0 : index
    %1 = vector.load %arg1[%c8, %c0_1] : memref<152x128xf32, #tpu.memory_space<vmem>>, vector<1x128xf32>
    %c0_2 = arith.constant 0 : index
    %c0_3 = arith.constant 0 : index
    %2 = vector.load %arg1[%c0_2, %c0_3] : memref<152x128xf32, #tpu.memory_space<vmem>>, vector<1x128xf32>
    %3 = vector.extract_strided_slice %0 {offsets = [0, 0], sizes = [8, 1], strides = [1, 1]} : vector<8x2xf32> to vector<8x1xf32>
    %4 = vector.broadcast %3 : vector<8x1xf32> to vector<8x128xf32>
    %5 = vector.broadcast %2 : vector<1x128xf32> to vector<8x128xf32>
    %6 = arith.mulf %4, %5 : vector<8x128xf32>
    %7 = vector.broadcast %1 : vector<1x128xf32> to vector<8x128xf32>
    %8 = arith.addf %7, %6 : vector<8x128xf32>
    %c1 = arith.constant 1 : index
    %c0_4 = arith.constant 0 : index
    %9 = vector.load %arg1[%c1, %c0_4] : memref<152x128xf32, #tpu.memory_space<vmem>>, vector<1x128xf32>
    %10 = vector.extract_strided_slice %0 {offsets = [0, 1], sizes = [8, 1], strides = [1, 1]} : vector<8x2xf32> to vector<8x1xf32>
    %11 = vector.broadcast %10 : vector<8x1xf32> to vector<8x128xf32>
    %12 = vector.broadcast %9 : vector<1x128xf32> to vector<8x128xf32>
    %13 = arith.mulf %11, %12 : vector<8x128xf32>
    %14 = arith.addf %8, %13 : vector<8x128xf32>
    %cst = arith.constant 0.000000e+00 : f32
    %15 = vector.broadcast %cst : f32 to vector<8x128xf32>
    %16 = arith.maximumf %14, %15 : vector<8x128xf32>
    %c16 = arith.constant 16 : index
    %c0_5 = arith.constant 0 : index
    %17 = vector.load %arg1[%c16, %c0_5] : memref<152x128xf32, #tpu.memory_space<vmem>>, vector<128x128xf32>
    %cst_6 = arith.constant dense<0.000000e+00> : vector<8x128xf32>
    %18 = tpu.matmul %16, %17, %cst_6 {dimension_numbers = #tpu.dot_dimension_numbers<[1], [0], [0], [1], [0, 0, 1, 1], [], []>} : vector<8x128xf32>, vector<128x128xf32>, vector<8x128xf32> -> vector<8x128xf32>
    %c144 = arith.constant 144 : index
    %c0_7 = arith.constant 0 : index
    %19 = vector.load %arg1[%c144, %c0_7] : memref<152x128xf32, #tpu.memory_space<vmem>>, vector<1x128xf32>
    %20 = vector.broadcast %19 : vector<1x128xf32> to vector<8x128xf32>
    %21 = arith.addf %18, %20 : vector<8x128xf32>
    %c0_8 = arith.constant 0 : index
    %c0_9 = arith.constant 0 : index
    %22 = vector.load %arg2[%c0_8, %c0_9] : memref<8x128xf32, #tpu.memory_space<vmem>>, vector<8x128xf32>
    tpu.vector_store %arg2[%c0_8, %c0_9], %21 {strides = array<i32>} : memref<8x128xf32, #tpu.memory_space<vmem>>, vector<8x128xf32>,
    return
  }
}

</mosaic_0001>

<llo_original>
// kernel: tpu_custom_call.1
$region0: #{tpu_custom_call.1}
  #allocation0 [shape = 'u32[]', space=smem, size = 0x4, offset = 0x4, fixed_abs, tag = 'smem constant byte address 0x4 - core index']
  #allocation1 [shape = 'u32[144,128]{1,0:T(1,128)}', space=vmem, size = 0x12000, scoped, tag = 'internal scratch']
  %s0 = inlined_call_operand.vmem [shape: f32[8,2], index: 0, kind: input, shape index: {}]
  %s1 = inlined_call_operand.hbm [shape: f32[152,128], index: 1, kind: input, shape index: {}]
  %s2 = inlined_call_operand.hbm [shape: f32[8,128], index: 2, kind: output, shape index: {}]
  %s3 = sld [smem:[#allocation0]]
  $region22: #{tpu_custom_call.1} parent=0
    _
  %s5 = ssub.s32 1, %s3
  %s6 = scalar_select 0, %s5, %s3
  $region1: #{tpu_custom_call.1} parent=0
    #allocation2 [shape = 'u8[77824]{0}', space=vmem, size = 0x13000, scoped, tag = 'input window, operand 1, single buffered']
    #allocation3 [shape = 's32[1]{0}', space=sflag, size = 0x4, scoped, tag = 'scoped memory for tpu_custom_call.1']
    #allocation4 [shape = 's32[1]{0}', space=sflag, size = 0x4, scoped, tag = 'scoped memory for tpu_custom_call.1']
    #allocation5 [shape = 'u8[4096]{0}', space=vmem, size = 0x1000, scoped, tag = 'output window, operand 0, single buffered']
    %7 = vsyncpa [#allocation3], 0
    %8 = vsyncpa [#allocation4], 0
    // Predicated region
    $region2: #{tpu_custom_call.1} parent=1 // pred_check
      _
    $region3: #{tpu_custom_call.1} parent=1 // pred_check_branch
      %10 = sbr.rel (0) target = $region5
    $region4: #{tpu_custom_call.1} parent=1 // pred_region
      _
    $region5: #{tpu_custom_call.1} parent=1 // pred_fallthru
      _
    // Predicated region
    $region6: #{tpu_custom_call.1} parent=1 // pred_check
      _
    $region7: #{tpu_custom_call.1} parent=1 // pred_check_branch
      %12 = sbr.rel (0) target = $region9
    $region8: #{tpu_custom_call.1} parent=1 // pred_region
      %s14 = ssub.s32 2432, 2432
      %15 = vsyncadd [#allocation3], %s14
      %s16 = sshll.u32 [#allocation2], 4
      %s17 = int_to_ptr.vmem [resolvable:$true] %s16
      %22 = dma.hbm_to_vmem [thread:$0]  %s1, 2432, %s17, [#allocation3], 128, 128, 8
    $region9: #{tpu_custom_call.1} parent=1 // pred_fallthru
      _
    // Predicated region
    $region10: #{tpu_custom_call.1} parent=1 // pred_check
      _
    $region11: #{tpu_custom_call.1} parent=1 // pred_check_branch
      %24 = sbr.rel (0) target = $region13
    $region12: #{tpu_custom_call.1} parent=1 // pred_region
      %25 = dma.done [#allocation3], 2432
    $region13: #{tpu_custom_call.1} parent=1 // pred_fallthru
      _
    %v26 = vld [vmem:[%s0] sm:$0xff]
    %v27 = vld [vmem:[#allocation2 + $0x8] sm:$0x1]
    %v28 = vld [vmem:[#allocation2] sm:$0x1]
    %30 = vset.pattern.permute.xlu0 0
    %31 = vperm.xlu0 %30, %v26
    %v32 = vpop.permute.xlu0 %31
    %v34 = vlaneseq
    %v35 = vshrl.u32 %v34, 7
    %v36 = vsub.s32 0, %v35
    %v37 = vrot.slane %v28, %v36
    %v38 = vmul.f32 %v32, %v37
    %v39 = vlaneseq
    %v40 = vshrl.u32 %v39, 7
    %v41 = vsub.s32 0, %v40
    %v42 = vrot.slane %v27, %v41
    %v43 = vadd.f32 %v42, %v38
    %v44 = vld [vmem:[#allocation2 + $0x1] sm:$0x1]
    %45 = vset.pattern.permute.xlu0 1
    %46 = vperm.xlu0 %45, %v26
    %v47 = vpop.permute.xlu0 %46
    %v49 = vlaneseq
    %v50 = vshrl.u32 %v49, 7
    %v51 = vsub.s32 0, %v50
    %v52 = vrot.slane %v44, %v51
    %v53 = vmul.f32 %v47, %v52
    %v54 = vadd.f32 %v43, %v53
    %v55 = vmax.f32 %v54, 0.0
    %v56 = vld [vmem:[#allocation2 + $0x10] sm:$0xff]
    %v57 = vld [vmem:[#allocation2 + $0x18] sm:$0xff]
    %v58 = vld [vmem:[#allocation2 + $0x20] sm:$0xff]
    %v59 = vld [vmem:[#allocation2 + $0x28] sm:$0xff]
    %v60 = vld [vmem:[#allocation2 + $0x30] sm:$0xff]
    %v61 = vld [vmem:[#allocation2 + $0x38] sm:$0xff]
    %v62 = vld [vmem:[#allocation2 + $0x40] sm:$0xff]
    %v63 = vld [vmem:[#allocation2 + $0x48] sm:$0xff]
    %v64 = vld [vmem:[#allocation2 + $0x50] sm:$0xff]
    %v65 = vld [vmem:[#allocation2 + $0x58] sm:$0xff]
    %v66 = vld [vmem:[#allocation2 + $0x60] sm:$0xff]
    %v67 = vld [vmem:[#allocation2 + $0x68] sm:$0xff]
    %v68 = vld [vmem:[#allocation2 + $0x70] sm:$0xff]
    %v69 = vld [vmem:[#allocation2 + $0x78] sm:$0xff]
    %v70 = vld [vmem:[#allocation2 + $0x80] sm:$0xff]
    %v71 = vld [vmem:[#allocation2 + $0x88] sm:$0xff]
    %v72 = vld [vmem:[#allocation2 + $0x90] sm:$0x1]
    %v73 = vlaneseq
    %v74 = vshrl.u32 %v73, 7
    %v75 = vsub.s32 0, %v74
    %v76 = vrot.slane %v72, %v75
    %77 = vmatprep.subr.mxu0 0.0
    %78 = vmatpush1.msra.mxu0 %v56
    %79 = vmatprep.subr.mxu0 0.0
    %80 = vmatpush1.msra.mxu0 %v57
    %81 = vmatprep.subr.mxu0 0.0
    %82 = vmatpush1.msra.mxu0 %v58
    %83 = vmatprep.subr.mxu0 0.0
    %84 = vmatpush1.msra.mxu0 %v59
    %85 = vmatprep.subr.mxu0 0.0
    %86 = vmatpush1.msra.mxu0 %v60
    %87 = vmatprep.subr.mxu0 0.0
    %88 = vmatpush1.msra.mxu0 %v61
    %89 = vmatprep.subr.mxu0 0.0
    %90 = vmatpush1.msra.mxu0 %v62
    %91 = vmatprep.subr.mxu0 0.0
    %92 = vmatpush1.msra.mxu0 %v63
    %93 = vmatprep.subr.mxu0 0.0
    %94 = vmatpush1.msra.mxu0 %v64
    %95 = vmatprep.subr.mxu0 0.0
    %96 = vmatpush1.msra.mxu0 %v65
    %97 = vmatprep.subr.mxu0 0.0
    %98 = vmatpush1.msra.mxu0 %v66
    %99 = vmatprep.subr.mxu0 0.0
    %100 = vmatpush1.msra.mxu0 %v67
    %101 = vmatprep.subr.mxu0 0.0
    %102 = vmatpush1.msra.mxu0 %v68
    %103 = vmatprep.subr.mxu0 0.0
    %104 = vmatpush1.msra.mxu0 %v69
    %105 = vmatprep.subr.mxu0 0.0
    %106 = vmatpush1.msra.mxu0 %v70
    %107 = vmatprep.subr.mxu0 0.0
    %108 = vmatpush1.msra.mxu0 %v71
    %109 = vmatprep.subr.mxu0 0.0
    %110 = vmatpush1.msra.mxu0 0.0
    %111 = vmatprep.subr.mxu0 0.0
    %112 = vmatpush1.msra.mxu0 0.0
    %113 = vmatprep.subr.mxu0 0.0
    %114 = vmatpush1.msra.mxu0 0.0
    %115 = vmatprep.subr.mxu0 0.0
    %116 = vmatpush1.msra.mxu0 0.0
    %117 = vmatprep.subr.mxu0 0.0
    %118 = vmatpush1.msra.mxu0 0.0
    %119 = vmatprep.subr.mxu0 0.0
    %120 = vmatpush1.msra.mxu0 0.0
    %121 = vmatprep.subr.mxu0 0.0
    %122 = vmatpush1.msra.mxu0 0.0
    %123 = vmatprep.subr.mxu0 0.0
    %124 = vmatpush1.msra.mxu0 0.0
    %125 = vmatprep.subr.mxu0 0.0
    %126 = vmatpush1.msra.mxu0 0.0
    %127 = vmatprep.subr.mxu0 0.0
    %128 = vmatpush1.msra.mxu0 0.0
    %129 = vmatprep.subr.mxu0 0.0
    %130 = vmatpush1.msra.mxu0 0.0
    %131 = vmatprep.subr.mxu0 0.0
    %132 = vmatpush1.msra.mxu0 0.0
    %133 = vmatprep.subr.mxu0 0.0
    %134 = vmatpush1.msra.mxu0 0.0
    %135 = vmatprep.subr.mxu0 0.0
    %136 = vmatpush1.msra.mxu0 0.0
    %137 = vmatprep.subr.mxu0 0.0
    %138 = vmatpush1.msra.mxu0 0.0
    %139 = vmatprep.subr.mxu0 0.0
    %140 = vmatpush1.msra.mxu0 0.0
    %141 = vmatprep.mubr.f32.mxu0 0.0
    %142 = vmatmul.mubr.f32.gmra.mrb[0].mxu0 %v55
    %v143 = vpop.f32.mrb[0].mxu0
    %v144 = vadd.f32 %v76, %v143
    %v145 = vpop.f32.mrb[0].mxu0
    %146 = vdwg.mxu0
    %147 = vst [vmem:[#allocation5] sm:$0xff] %v144
    // Predicated region
    $region14: #{tpu_custom_call.1} parent=1 // pred_check
      _
    $region15: #{tpu_custom_call.1} parent=1 // pred_check_branch
      %149 = sbr.rel (0) target = $region17
    $region16: #{tpu_custom_call.1} parent=1 // pred_region
      %s151 = ssub.s32 128, 128
      %152 = vsyncadd [#allocation4], %s151
      %s154 = sshll.u32 [#allocation5], 4
      %s155 = int_to_ptr.vmem [resolvable:$true] %s154
      %157 = dma.vmem_to_hbm [thread:$0]  %s155, 128, %s2, [#allocation4]
    $region17: #{tpu_custom_call.1} parent=1 // pred_fallthru
      _
    // Predicated region
    $region18: #{tpu_custom_call.1} parent=1 // pred_check
      _
    $region19: #{tpu_custom_call.1} parent=1 // pred_check_branch
      %159 = sbr.rel (0) target = $region21
    $region20: #{tpu_custom_call.1} parent=1 // pred_region
      %160 = dma.done [#allocation4], 128
    $region21: #{tpu_custom_call.1} parent=1 // pred_fallthru
      _
    %161 = vsyncpa [#allocation3], 1
    %162 = vsyncpa [#allocation4], 1

</llo_original>
